<compile_context>
chip_gen: v5e
topology: v5e:2x2
jax: 0.10.0
libtpu: 0.0.40
codegen_flags: <defaults>
</compile_context>

<pallas_src>
import numpy as np
import jax
import jax.numpy as jnp
from jax.experimental import pallas as pl
from jax.experimental.pallas import tpu as pltpu


# ---------------------------------------------------------------------------
# positional encoding (same as the PyTorch helper)
# ---------------------------------------------------------------------------
def get_positional_encoding(seq_len, d, n=10000):
    P = np.zeros((seq_len, d))
    for k in range(seq_len):
        for i in np.arange(int(d / 2)):
            denominator = np.power(n, 2 * i / d)
            P[k, 2 * i] = np.sin(k / denominator)
            P[k, 2 * i + 1] = np.cos(k / denominator)
    P = np.expand_dims(np.transpose(P), 0).astype('float32')  # (1, d, seq_len)
    return P


def _round_up(x, m):
    return ((x + m - 1) // m) * m


# ---------------------------------------------------------------------------
# fused Pallas kernel: whole DenseBlock in one launch
# ---------------------------------------------------------------------------
def make_dense_block_kernel(nb_layers, growth, c_total, L):
    """Builds the fused kernel.  All channel offsets are static Python ints."""

    def kernel(*refs):
        x_ref, pe_ref, wf_ref, bf_ref = refs[:4]
        layer_refs = refs[4:4 + 8 * nb_layers]
        o_ref = refs[4 + 8 * nb_layers]

        N = x_ref.shape[1]                       # padded B*L (multiple of 128)

        # 0/1 shift matrices for the k=3/pad=1 conv.  Columns are laid out
        # n = b*L + l, so the shift must zero across every length-L boundary
        # (that zeroing is baked into the matrices).  Built once, hoisted.
        r = jax.lax.broadcasted_iota(jnp.int32, (N, N), 0)
        c = jax.lax.broadcasted_iota(jnp.int32, (N, N), 1)
        pos = c % L                              # within-sequence position of col n
        s_prev = ((r == c - 1) & (pos != 0)).astype(jnp.float32)      # col n <- n-1
        s_next = ((r == c + 1) & (pos != L - 1)).astype(jnp.float32)  # col n <- n+1

        # positional encoding + first 1x1 conv (reduce_input=True)
        xin = x_ref[...] + pe_ref[...]
        cur = jnp.dot(wf_ref[...], xin,
                      preferred_element_type=jnp.float32) + bf_ref[...]
        o_ref[c_total - growth:c_total, :] = cur

        # dense layers; the growing feature map stays register-resident,
        # newest piece first (matches torch.cat([out, x], dim=1)).
        pieces = [cur]
        for i in range(nb_layers):
            s1, t1, w1, b1, s2, t2, w2f, b2 = layer_refs[8 * i:8 * (i + 1)]
            x_cat = pieces[0] if len(pieces) == 1 else jnp.concatenate(pieces, axis=0)

            # BN(eval, folded affine) + ReLU -> 1x1 conv
            a = jnp.maximum(x_cat * s1[...] + t1[...], 0.0)
            h = jnp.dot(w1[...], a, preferred_element_type=jnp.float32) + b1[...]
            # BN(eval, folded affine) + ReLU
            h = jnp.maximum(h * s2[...] + t2[...], 0.0)

            # k=3, pad=1 conv: shifted taps via MXU, stacked -> single matmul
            prev = jnp.dot(h, s_prev, preferred_element_type=jnp.float32)
            nxt = jnp.dot(h, s_next, preferred_element_type=jnp.float32)
            hs = jnp.concatenate([prev, h, nxt], axis=0)          # (3*Cmid, N)
            out = jnp.dot(w2f[...], hs,
                          preferred_element_type=jnp.float32) + b2[...]

            off = c_total - (i + 2) * growth
            o_ref[off:off + growth, :] = out                       # == torch.cat
            pieces.insert(0, out)

    return kernel


# ---------------------------------------------------------------------------
# wrapper: layout plumbing + one pallas_call
# ---------------------------------------------------------------------------
def dense_block_forward(x, params):
    growth = params['growth']
    nb_layers = len(params['layers'])
    B, cin, L = x.shape
    c_total = growth * (nb_layers + 1)           # reduce_input=True -> block_in=growth
    cin_pad = _round_up(cin, 8)
    n_real = B * L
    n_pad = _round_up(n_real, 128)               # lane-dense stores

    # (B, C, L) -> (C, B*L); pad channels to x8 and lanes to x128 (zeros).
    x2d = jnp.transpose(x, (1, 0, 2)).reshape(cin, n_real)
    x2d = jnp.pad(x2d, ((0, cin_pad - cin), (0, n_pad - n_real)))
    pe2d = jnp.tile(params['pe'][0], (1, B))     # column b*L+l -> pe[:, l]
    pe2d = jnp.pad(pe2d, ((0, cin_pad - cin), (0, n_pad - n_real)))
    wf = jnp.pad(params['wf'], ((0, 0), (0, cin_pad - cin)))

    flat = []
    for (s1, t1, w1, b1, s2, t2, w2, b2) in params['layers']:
        cout, cmid, _ = w2.shape
        # w2f[o, t*cmid + c] = w2[o, c, t]  (matches the [prev, h, nxt] stacking)
        w2f = jnp.transpose(w2, (0, 2, 1)).reshape(cout, 3 * cmid)
        flat += [s1, t1, w1, b1, s2, t2, w2f, b2]

    n_in = 4 + 8 * nb_layers
    y2d = pl.pallas_call(
        make_dense_block_kernel(nb_layers, growth, c_total, L),
        out_shape=jax.ShapeDtypeStruct((c_total, n_pad), jnp.float32),
        in_specs=[pl.BlockSpec(memory_space=pltpu.MemorySpace.VMEM)] * n_in,
        out_specs=pl.BlockSpec(memory_space=pltpu.MemorySpace.VMEM),
    )(x2d, pe2d, wf, params['bf'], *flat)

    # (C_total, B*L) -> (B, C_total, L)
    y = y2d[:, :n_real].reshape(c_total, B, L)
    return jnp.transpose(y, (1, 0, 2))


# ---------------------------------------------------------------------------
# deterministic parameter construction
# ---------------------------------------------------------------------------
def build_params(key, in_channels, input_len, growth_rate, bottleneck, nb_layers):
    eps = 1e-5
    keys = jax.random.split(key, 2 + 2 * nb_layers)

    def kaiming_normal(k, shape, fan_in):
        return (jax.random.normal(k, shape, jnp.float32)
                * np.float32(np.sqrt(2.0 / fan_in)))

    pe = jnp.asarray(get_positional_encoding(input_len, in_channels))  # (1, Cin, L)

    # first_conv: Conv1d(in_channels -> growth_rate, k=1)
    wf = kaiming_normal(keys[0], (growth_rate, in_channels), in_channels)
    bf = jnp.zeros((growth_rate, 1), jnp.float32)

    cmid = int(bottleneck * growth_rate)
    block_in = growth_rate  # reduce_input=True
    # eval-mode BatchNorm with weight=1, bias=0, running_mean=0, running_var=1
    bn_scale = np.float32(1.0 / np.sqrt(1.0 + eps))

    layers = []
    for i in range(nb_layers):
        cin = block_in + i * growth_rate
        k1, k2 = keys[2 + 2 * i], keys[3 + 2 * i]
        s1 = jnp.full((cin, 1), bn_scale, jnp.float32)
        t1 = jnp.zeros((cin, 1), jnp.float32)
        w1 = kaiming_normal(k1, (cmid, cin), cin * 1)              # conv1: k=1
        b1 = jnp.zeros((cmid, 1), jnp.float32)
        s2 = jnp.full((cmid, 1), bn_scale, jnp.float32)
        t2 = jnp.zeros((cmid, 1), jnp.float32)
        w2 = kaiming_normal(k2, (growth_rate, cmid, 3), cmid * 3)  # conv2: k=3
        b2 = jnp.zeros((growth_rate, 1), jnp.float32)
        layers.append((s1, t1, w1, b1, s2, t2, w2, b2))

    return {'pe': pe, 'wf': wf, 'bf': bf, 'layers': layers, 'growth': growth_rate}


# ---------------------------------------------------------------------------
# pure-JAX reference (mirrors the PyTorch forward) for verification
# ---------------------------------------------------------------------------
def ref_forward(x, params):
    x = x + params['pe']
    x = jnp.einsum('oc,bcl->bol', params['wf'], x) + params['bf'][None, :, :]
    for (s1, t1, w1, b1, s2, t2, w2, b2) in params['layers']:
        a = jnp.maximum(x * s1[None, :, :] + t1[None, :, :], 0.0)
        h = jnp.einsum('oc,bcl->bol', w1, a) + b1[None, :, :]
        h = jnp.maximum(h * s2[None, :, :] + t2[None, :, :], 0.0)
        hp = jnp.pad(h, ((0, 0), (0, 0), (1, 1)))
        L = x.shape[-1]
        out = sum(jnp.einsum('oc,bcl->bol', w2[:, :, t], hp[:, :, t:t + L])
                  for t in range(3)) + b2[None, :, :]
        x = jnp.concatenate([out, x], axis=1)
    return x


# TODO(synk): BatchNorm is reproduced in eval mode (running stats folded into an
# affine); training-mode batch statistics and active Dropout are not reproduced
# (dropout is configured off here, matching dropout=None); groups=1 so no
# channel permutation is needed.

if __name__ == "__main__":
    B, C_IN, L = 2, 4, 16
    GROWTH, BOTTLENECK, NB_LAYERS = 8, 2, 2

    key = jax.random.PRNGKey(0)
    kx, kp = jax.random.split(key)
    x = jax.random.normal(kx, (B, C_IN, L), jnp.float32)
    params = build_params(kp, C_IN, L, GROWTH, BOTTLENECK, NB_LAYERS)

    y = dense_block_forward(x, params)
    y = jax.block_until_ready(y)

    y_ref = jax.block_until_ready(ref_forward(x, params))
    assert y.shape == (B, GROWTH + NB_LAYERS * GROWTH, L), y.shape
    np.testing.assert_allclose(np.asarray(y), np.asarray(y_ref), rtol=1e-4, atol=1e-4)

    print("KERNEL_OK")
</pallas_src>

<mosaic_0001>
module attributes {stable_mosaic.version = 11 : i64} {
  func.func @kernel(%arg0: memref<8x128xf32, #tpu.memory_space<vmem>>, %arg1: memref<8x128xf32, #tpu.memory_space<vmem>>, %arg2: memref<8x8xf32, #tpu.memory_space<vmem>>, %arg3: memref<8x1xf32, #tpu.memory_space<vmem>>, %arg4: memref<8x1xf32, #tpu.memory_space<vmem>>, %arg5: memref<8x1xf32, #tpu.memory_space<vmem>>, %arg6: memref<16x8xf32, #tpu.memory_space<vmem>>, %arg7: memref<16x1xf32, #tpu.memory_space<vmem>>, %arg8: memref<16x1xf32, #tpu.memory_space<vmem>>, %arg9: memref<16x1xf32, #tpu.memory_space<vmem>>, %arg10: memref<8x48xf32, #tpu.memory_space<vmem>>, %arg11: memref<8x1xf32, #tpu.memory_space<vmem>>, %arg12: memref<16x1xf32, #tpu.memory_space<vmem>>, %arg13: memref<16x1xf32, #tpu.memory_space<vmem>>, %arg14: memref<16x16xf32, #tpu.memory_space<vmem>>, %arg15: memref<16x1xf32, #tpu.memory_space<vmem>>, %arg16: memref<16x1xf32, #tpu.memory_space<vmem>>, %arg17: memref<16x1xf32, #tpu.memory_space<vmem>>, %arg18: memref<8x48xf32, #tpu.memory_space<vmem>>, %arg19: memref<8x1xf32, #tpu.memory_space<vmem>>, %arg20: memref<24x128xf32, #tpu.memory_space<vmem>>) attributes {dimension_semantics = [], scalar_prefetch = 0 : i64, scratch_operands = 0 : i64, tpu.core_type = #tpu.core_type<tc>} {
    %0 = tpu.iota {dimensions = array<i32: 0>} : vector<128x128xi32>
    %1 = tpu.iota {dimensions = array<i32: 1>} : vector<128x128xi32>
    %c16_i32 = arith.constant 16 : i32
    %c0_i32 = arith.constant 0 : i32
    %2 = arith.cmpi eq, %c16_i32, %c0_i32 : i32
    %c1_i32 = arith.constant 1 : i32
    %3 = arith.select %2, %c1_i32, %c16_i32 : i32
    %4 = vector.broadcast %3 : i32 to vector<128x128xi32>
    %5 = arith.remsi %1, %4 : vector<128x128xi32>
    %c0_i32_0 = arith.constant 0 : i32
    %6 = vector.broadcast %c0_i32_0 : i32 to vector<128x128xi32>
    %7 = arith.cmpi ne, %5, %6 : vector<128x128xi32>
    %c0_i32_1 = arith.constant 0 : i32
    %8 = vector.broadcast %c0_i32_1 : i32 to vector<128x128xi32>
    %9 = arith.cmpi slt, %5, %8 : vector<128x128xi32>
    %c0_i32_2 = arith.constant 0 : i32
    %10 = arith.cmpi slt, %3, %c0_i32_2 : i32
    %11 = vector.broadcast %10 : i1 to vector<128x128xi1>
    %12 = vector.broadcast %11 : vector<128x128xi1> to vector<128x128xi1>
    %13 = arith.xori %9, %12 : vector<128x128xi1>
    %14 = arith.andi %13, %7 : vector<128x128xi1>
    %15 = vector.broadcast %3 : i32 to vector<128x128xi32>
    %16 = arith.addi %5, %15 : vector<128x128xi32>
    %17 = arith.select %14, %16, %5 : vector<128x128xi1>, vector<128x128xi32>
    %c1_i32_3 = arith.constant 1 : i32
    %18 = vector.broadcast %c1_i32_3 : i32 to vector<128x128xi32>
    %19 = arith.subi %1, %18 : vector<128x128xi32>
    %20 = arith.cmpi eq, %0, %19 : vector<128x128xi32>
    %c0_i32_4 = arith.constant 0 : i32
    %21 = vector.broadcast %c0_i32_4 : i32 to vector<128x128xi32>
    %22 = arith.cmpi ne, %17, %21 : vector<128x128xi32>
    %23 = arith.andi %20, %22 : vector<128x128xi1>
    %24 = arith.extui %23 : vector<128x128xi1> to vector<128x128xi32>
    %25 = arith.sitofp %24 : vector<128x128xi32> to vector<128x128xf32>
    %c1_i32_5 = arith.constant 1 : i32
    %26 = vector.broadcast %c1_i32_5 : i32 to vector<128x128xi32>
    %27 = arith.addi %1, %26 : vector<128x128xi32>
    %28 = arith.cmpi eq, %0, %27 : vector<128x128xi32>
    %c15_i32 = arith.constant 15 : i32
    %29 = vector.broadcast %c15_i32 : i32 to vector<128x128xi32>
    %30 = arith.cmpi ne, %17, %29 : vector<128x128xi32>
    %31 = arith.andi %28, %30 : vector<128x128xi1>
    %32 = arith.extui %31 : vector<128x128xi1> to vector<128x128xi32>
    %33 = arith.sitofp %32 : vector<128x128xi32> to vector<128x128xf32>
    %c0 = arith.constant 0 : index
    %c0_6 = arith.constant 0 : index
    %34 = vector.load %arg0[%c0, %c0_6] : memref<8x128xf32, #tpu.memory_space<vmem>>, vector<8x128xf32>
    %c0_7 = arith.constant 0 : index
    %c0_8 = arith.constant 0 : index
    %35 = vector.load %arg1[%c0_7, %c0_8] : memref<8x128xf32, #tpu.memory_space<vmem>>, vector<8x128xf32>
    %36 = arith.addf %34, %35 : vector<8x128xf32>
    %c0_9 = arith.constant 0 : index
    %c0_10 = arith.constant 0 : index
    %37 = vector.load %arg2[%c0_9, %c0_10] : memref<8x8xf32, #tpu.memory_space<vmem>>, vector<8x8xf32>
    %cst = arith.constant dense<0.000000e+00> : vector<8x128xf32>
    %38 = tpu.matmul %37, %36, %cst {dimension_numbers = #tpu.dot_dimension_numbers<[1], [0], [0], [1], [0, 0, 1, 1], [], []>} : vector<8x8xf32>, vector<8x128xf32>, vector<8x128xf32> -> vector<8x128xf32>
    %c0_11 = arith.constant 0 : index
    %c0_12 = arith.constant 0 : index
    %39 = vector.load %arg3[%c0_11, %c0_12] : memref<8x1xf32, #tpu.memory_space<vmem>>, vector<8x1xf32>
    %40 = vector.broadcast %39 : vector<8x1xf32> to vector<8x128xf32>
    %41 = arith.addf %38, %40 : vector<8x128xf32>
    %c16 = arith.constant 16 : index
    %c0_13 = arith.constant 0 : index
    %42 = vector.load %arg20[%c16, %c0_13] : memref<24x128xf32, #tpu.memory_space<vmem>>, vector<8x128xf32>
    tpu.vector_store %arg20[%c16, %c0_13], %41 {strides = array<i32>} : memref<24x128xf32, #tpu.memory_space<vmem>>, vector<8x128xf32>,
    %c0_14 = arith.constant 0 : index
    %c0_15 = arith.constant 0 : index
    %43 = vector.load %arg4[%c0_14, %c0_15] : memref<8x1xf32, #tpu.memory_space<vmem>>, vector<8x1xf32>
    %44 = vector.broadcast %43 : vector<8x1xf32> to vector<8x128xf32>
    %45 = arith.mulf %41, %44 : vector<8x128xf32>
    %c0_16 = arith.constant 0 : index
    %c0_17 = arith.constant 0 : index
    %46 = vector.load %arg5[%c0_16, %c0_17] : memref<8x1xf32, #tpu.memory_space<vmem>>, vector<8x1xf32>
    %47 = vector.broadcast %46 : vector<8x1xf32> to vector<8x128xf32>
    %48 = arith.addf %45, %47 : vector<8x128xf32>
    %cst_18 = arith.constant 0.000000e+00 : f32
    %49 = vector.broadcast %cst_18 : f32 to vector<8x128xf32>
    %50 = arith.maximumf %48, %49 : vector<8x128xf32>
    %c0_19 = arith.constant 0 : index
    %c0_20 = arith.constant 0 : index
    %51 = vector.load %arg6[%c0_19, %c0_20] : memref<16x8xf32, #tpu.memory_space<vmem>>, vector<16x8xf32>
    %cst_21 = arith.constant dense<0.000000e+00> : vector<16x128xf32>
    %52 = tpu.matmul %51, %50, %cst_21 {dimension_numbers = #tpu.dot_dimension_numbers<[1], [0], [0], [1], [0, 0, 1, 1], [], []>} : vector<16x8xf32>, vector<8x128xf32>, vector<16x128xf32> -> vector<16x128xf32>
    %c0_22 = arith.constant 0 : index
    %c0_23 = arith.constant 0 : index
    %53 = vector.load %arg7[%c0_22, %c0_23] : memref<16x1xf32, #tpu.memory_space<vmem>>, vector<16x1xf32>
    %54 = vector.broadcast %53 : vector<16x1xf32> to vector<16x128xf32>
    %55 = arith.addf %52, %54 : vector<16x128xf32>
    %c0_24 = arith.constant 0 : index
    %c0_25 = arith.constant 0 : index
    %56 = vector.load %arg8[%c0_24, %c0_25] : memref<16x1xf32, #tpu.memory_space<vmem>>, vector<16x1xf32>
    %57 = vector.broadcast %56 : vector<16x1xf32> to vector<16x128xf32>
    %58 = arith.mulf %55, %57 : vector<16x128xf32>
    %c0_26 = arith.constant 0 : index
    %c0_27 = arith.constant 0 : index
    %59 = vector.load %arg9[%c0_26, %c0_27] : memref<16x1xf32, #tpu.memory_space<vmem>>, vector<16x1xf32>
    %60 = vector.broadcast %59 : vector<16x1xf32> to vector<16x128xf32>
    %61 = arith.addf %58, %60 : vector<16x128xf32>
    %cst_28 = arith.constant 0.000000e+00 : f32
    %62 = vector.broadcast %cst_28 : f32 to vector<16x128xf32>
    %63 = arith.maximumf %61, %62 : vector<16x128xf32>
    %cst_29 = arith.constant dense<0.000000e+00> : vector<16x128xf32>
    %64 = tpu.matmul %63, %25, %cst_29 {dimension_numbers = #tpu.dot_dimension_numbers<[1], [0], [0], [1], [0, 0, 1, 1], [], []>} : vector<16x128xf32>, vector<128x128xf32>, vector<16x128xf32> -> vector<16x128xf32>
    %cst_30 = arith.constant dense<0.000000e+00> : vector<16x128xf32>
    %65 = tpu.matmul %63, %33, %cst_30 {dimension_numbers = #tpu.dot_dimension_numbers<[1], [0], [0], [1], [0, 0, 1, 1], [], []>} : vector<16x128xf32>, vector<128x128xf32>, vector<16x128xf32> -> vector<16x128xf32>
    %66 = tpu.concatenate %64, %63, %65 in 0 : vector<16x128xf32>, vector<16x128xf32>, vector<16x128xf32> -> vector<48x128xf32>
    %c0_31 = arith.constant 0 : index
    %c0_32 = arith.constant 0 : index
    %67 = vector.load %arg10[%c0_31, %c0_32] : memref<8x48xf32, #tpu.memory_space<vmem>>, vector<8x48xf32>
    %cst_33 = arith.constant dense<0.000000e+00> : vector<8x128xf32>
    %68 = tpu.matmul %67, %66, %cst_33 {dimension_numbers = #tpu.dot_dimension_numbers<[1], [0], [0], [1], [0, 0, 1, 1], [], []>} : vector<8x48xf32>, vector<48x128xf32>, vector<8x128xf32> -> vector<8x128xf32>
    %c0_34 = arith.constant 0 : index
    %c0_35 = arith.constant 0 : index
    %69 = vector.load %arg11[%c0_34, %c0_35] : memref<8x1xf32, #tpu.memory_space<vmem>>, vector<8x1xf32>
    %70 = vector.broadcast %69 : vector<8x1xf32> to vector<8x128xf32>
    %71 = arith.addf %68, %70 : vector<8x128xf32>
    %c8 = arith.constant 8 : index
    %c0_36 = arith.constant 0 : index
    %72 = vector.load %arg20[%c8, %c0_36] : memref<24x128xf32, #tpu.memory_space<vmem>>, vector<8x128xf32>
    tpu.vector_store %arg20[%c8, %c0_36], %71 {strides = array<i32>} : memref<24x128xf32, #tpu.memory_space<vmem>>, vector<8x128xf32>,
    %73 = tpu.concatenate %71, %41 in 0 : vector<8x128xf32>, vector<8x128xf32> -> vector<16x128xf32>
    %c0_37 = arith.constant 0 : index
    %c0_38 = arith.constant 0 : index
    %74 = vector.load %arg12[%c0_37, %c0_38] : memref<16x1xf32, #tpu.memory_space<vmem>>, vector<16x1xf32>
    %75 = vector.broadcast %74 : vector<16x1xf32> to vector<16x128xf32>
    %76 = arith.mulf %73, %75 : vector<16x128xf32>
    %c0_39 = arith.constant 0 : index
    %c0_40 = arith.constant 0 : index
    %77 = vector.load %arg13[%c0_39, %c0_40] : memref<16x1xf32, #tpu.memory_space<vmem>>, vector<16x1xf32>
    %78 = vector.broadcast %77 : vector<16x1xf32> to vector<16x128xf32>
    %79 = arith.addf %76, %78 : vector<16x128xf32>
    %cst_41 = arith.constant 0.000000e+00 : f32
    %80 = vector.broadcast %cst_41 : f32 to vector<16x128xf32>
    %81 = arith.maximumf %79, %80 : vector<16x128xf32>
    %c0_42 = arith.constant 0 : index
    %c0_43 = arith.constant 0 : index
    %82 = vector.load %arg14[%c0_42, %c0_43] : memref<16x16xf32, #tpu.memory_space<vmem>>, vector<16x16xf32>
    %cst_44 = arith.constant dense<0.000000e+00> : vector<16x128xf32>
    %83 = tpu.matmul %82, %81, %cst_44 {dimension_numbers = #tpu.dot_dimension_numbers<[1], [0], [0], [1], [0, 0, 1, 1], [], []>} : vector<16x16xf32>, vector<16x128xf32>, vector<16x128xf32> -> vector<16x128xf32>
    %c0_45 = arith.constant 0 : index
    %c0_46 = arith.constant 0 : index
    %84 = vector.load %arg15[%c0_45, %c0_46] : memref<16x1xf32, #tpu.memory_space<vmem>>, vector<16x1xf32>
    %85 = vector.broadcast %84 : vector<16x1xf32> to vector<16x128xf32>
    %86 = arith.addf %83, %85 : vector<16x128xf32>
    %c0_47 = arith.constant 0 : index
    %c0_48 = arith.constant 0 : index
    %87 = vector.load %arg16[%c0_47, %c0_48] : memref<16x1xf32, #tpu.memory_space<vmem>>, vector<16x1xf32>
    %88 = vector.broadcast %87 : vector<16x1xf32> to vector<16x128xf32>
    %89 = arith.mulf %86, %88 : vector<16x128xf32>
    %c0_49 = arith.constant 0 : index
    %c0_50 = arith.constant 0 : index
    %90 = vector.load %arg17[%c0_49, %c0_50] : memref<16x1xf32, #tpu.memory_space<vmem>>, vector<16x1xf32>
    %91 = vector.broadcast %90 : vector<16x1xf32> to vector<16x128xf32>
    %92 = arith.addf %89, %91 : vector<16x128xf32>
    %cst_51 = arith.constant 0.000000e+00 : f32
    %93 = vector.broadcast %cst_51 : f32 to vector<16x128xf32>
    %94 = arith.maximumf %92, %93 : vector<16x128xf32>
    %cst_52 = arith.constant dense<0.000000e+00> : vector<16x128xf32>
    %95 = tpu.matmul %94, %25, %cst_52 {dimension_numbers = #tpu.dot_dimension_numbers<[1], [0], [0], [1], [0, 0, 1, 1], [], []>} : vector<16x128xf32>, vector<128x128xf32>, vector<16x128xf32> -> vector<16x128xf32>
    %cst_53 = arith.constant dense<0.000000e+00> : vector<16x128xf32>
    %96 = tpu.matmul %94, %33, %cst_53 {dimension_numbers = #tpu.dot_dimension_numbers<[1], [0], [0], [1], [0, 0, 1, 1], [], []>} : vector<16x128xf32>, vector<128x128xf32>, vector<16x128xf32> -> vector<16x128xf32>
    %97 = tpu.concatenate %95, %94, %96 in 0 : vector<16x128xf32>, vector<16x128xf32>, vector<16x128xf32> -> vector<48x128xf32>
    %c0_54 = arith.constant 0 : index
    %c0_55 = arith.constant 0 : index
    %98 = vector.load %arg18[%c0_54, %c0_55] : memref<8x48xf32, #tpu.memory_space<vmem>>, vector<8x48xf32>
    %cst_56 = arith.constant dense<0.000000e+00> : vector<8x128xf32>
    %99 = tpu.matmul %98, %97, %cst_56 {dimension_numbers = #tpu.dot_dimension_numbers<[1], [0], [0], [1], [0, 0, 1, 1], [], []>} : vector<8x48xf32>, vector<48x128xf32>, vector<8x128xf32> -> vector<8x128xf32>
    %c0_57 = arith.constant 0 : index
    %c0_58 = arith.constant 0 : index
    %100 = vector.load %arg19[%c0_57, %c0_58] : memref<8x1xf32, #tpu.memory_space<vmem>>, vector<8x1xf32>
    %101 = vector.broadcast %100 : vector<8x1xf32> to vector<8x128xf32>
    %102 = arith.addf %99, %101 : vector<8x128xf32>
    %c0_59 = arith.constant 0 : index
    %c0_60 = arith.constant 0 : index
    %103 = vector.load %arg20[%c0_59, %c0_60] : memref<24x128xf32, #tpu.memory_space<vmem>>, vector<8x128xf32>
    tpu.vector_store %arg20[%c0_59, %c0_60], %102 {strides = array<i32>} : memref<24x128xf32, #tpu.memory_space<vmem>>, vector<8x128xf32>,
    return
  }
}

</mosaic_0001>

<llo_original>
// kernel: tpu_custom_call.1
$region0: #{tpu_custom_call.1}
  #allocation0 [shape = 'u32[]', space=smem, size = 0x4, offset = 0x4, fixed_abs, tag = 'smem constant byte address 0x4 - core index']
  #allocation1 [shape = 'u32[72,128]{1,0:T(1,128)}', space=vmem, size = 0x9000, scoped, tag = 'internal scratch']
  %s0 = inlined_call_operand.vmem [shape: f32[8,128], index: 0, kind: input, shape index: {}]
  %s1 = inlined_call_operand.vmem [shape: f32[8,128], index: 1, kind: input, shape index: {}]
  %s2 = inlined_call_operand.vmem [shape: f32[8,8], index: 2, kind: input, shape index: {}]
  %s3 = inlined_call_operand.vmem [shape: f32[8,1], index: 3, kind: input, shape index: {}]
  %s4 = inlined_call_operand.vmem [shape: f32[8,1], index: 4, kind: input, shape index: {}]
  %s5 = inlined_call_operand.vmem [shape: f32[8,1], index: 5, kind: input, shape index: {}]
  %s6 = inlined_call_operand.vmem [shape: f32[16,8], index: 6, kind: input, shape index: {}]
  %s7 = inlined_call_operand.vmem [shape: f32[16,1], index: 7, kind: input, shape index: {}]
  %s8 = inlined_call_operand.vmem [shape: f32[16,1], index: 8, kind: input, shape index: {}]
  %s9 = inlined_call_operand.vmem [shape: f32[16,1], index: 9, kind: input, shape index: {}]
  %s10 = inlined_call_operand.vmem [shape: f32[8,48], index: 10, kind: input, shape index: {}]
  %s11 = inlined_call_operand.vmem [shape: f32[8,1], index: 11, kind: input, shape index: {}]
  %s12 = inlined_call_operand.vmem [shape: f32[16,1], index: 12, kind: input, shape index: {}]
  %s13 = inlined_call_operand.vmem [shape: f32[16,1], index: 13, kind: input, shape index: {}]
  %s14 = inlined_call_operand.vmem [shape: f32[16,16], index: 14, kind: input, shape index: {}]
  %s15 = inlined_call_operand.vmem [shape: f32[16,1], index: 15, kind: input, shape index: {}]
  %s16 = inlined_call_operand.vmem [shape: f32[16,1], index: 16, kind: input, shape index: {}]
  %s17 = inlined_call_operand.vmem [shape: f32[16,1], index: 17, kind: input, shape index: {}]
  %s18 = inlined_call_operand.vmem [shape: f32[8,48], index: 18, kind: input, shape index: {}]
  %s19 = inlined_call_operand.vmem [shape: f32[8,1], index: 19, kind: input, shape index: {}]
  %s20 = inlined_call_operand.hbm [shape: f32[24,128], index: 20, kind: output, shape index: {}]
  %s21 = sld [smem:[#allocation0]]
  $region90: #{tpu_custom_call.1} parent=0
    _
  %s23 = ssub.s32 1, %s21
  %s24 = scalar_select 0, %s23, %s21
  $region1: #{tpu_custom_call.1} parent=0
    #allocation2 [shape = 'u8[12288]{0}', space=vmem, size = 0x3000, scoped, tag = 'output window, operand 0, single buffered']
    #allocation3 [shape = 's32[1]{0}', space=sflag, size = 0x4, scoped, tag = 'scoped memory for tpu_custom_call.1']
    %25 = vsyncpa [#allocation3], 0
    // Predicated region
    $region2: #{tpu_custom_call.1} parent=1 // pred_check
      _
    $region3: #{tpu_custom_call.1} parent=1 // pred_check_branch
      %27 = sbr.rel (0) target = $region5
    $region4: #{tpu_custom_call.1} parent=1 // pred_region
      _
    $region5: #{tpu_custom_call.1} parent=1 // pred_fallthru
      _
    // Predicated region
    $region6: #{tpu_custom_call.1} parent=1 // pred_check
      _
    $region7: #{tpu_custom_call.1} parent=1 // pred_check_branch
      %29 = sbr.rel (0) target = $region9
    $region8: #{tpu_custom_call.1} parent=1 // pred_region
      _
    $region9: #{tpu_custom_call.1} parent=1 // pred_fallthru
      _
    // Predicated region
    $region10: #{tpu_custom_call.1} parent=1 // pred_check
      _
    $region11: #{tpu_custom_call.1} parent=1 // pred_check_branch
      %31 = sbr.rel (0) target = $region13
    $region12: #{tpu_custom_call.1} parent=1 // pred_region
      _
    $region13: #{tpu_custom_call.1} parent=1 // pred_fallthru
      _
    // Predicated region
    $region14: #{tpu_custom_call.1} parent=1 // pred_check
      _
    $region15: #{tpu_custom_call.1} parent=1 // pred_check_branch
      %33 = sbr.rel (0) target = $region17
    $region16: #{tpu_custom_call.1} parent=1 // pred_region
      _
    $region17: #{tpu_custom_call.1} parent=1 // pred_fallthru
      _
    // Predicated region
    $region18: #{tpu_custom_call.1} parent=1 // pred_check
      _
    $region19: #{tpu_custom_call.1} parent=1 // pred_check_branch
      %35 = sbr.rel (0) target = $region21
    $region20: #{tpu_custom_call.1} parent=1 // pred_region
      _
    $region21: #{tpu_custom_call.1} parent=1 // pred_fallthru
      _
    // Predicated region
    $region22: #{tpu_custom_call.1} parent=1 // pred_check
      _
    $region23: #{tpu_custom_call.1} parent=1 // pred_check_branch
      %37 = sbr.rel (0) target = $region25
    $region24: #{tpu_custom_call.1} parent=1 // pred_region
      _
    $region25: #{tpu_custom_call.1} parent=1 // pred_fallthru
      _
    // Predicated region
    $region26: #{tpu_custom_call.1} parent=1 // pred_check
      _
    $region27: #{tpu_custom_call.1} parent=1 // pred_check_branch
      %39 = sbr.rel (0) target = $region29
    $region28: #{tpu_custom_call.1} parent=1 // pred_region
      _
    $region29: #{tpu_custom_call.1} parent=1 // pred_fallthru
      _
    // Predicated region
    $region30: #{tpu_custom_call.1} parent=1 // pred_check
      _
    $region31: #{tpu_custom_call.1} parent=1 // pred_check_branch
      %41 = sbr.rel (0) target = $region33
    $region32: #{tpu_custom_call.1} parent=1 // pred_region
      _
    $region33: #{tpu_custom_call.1} parent=1 // pred_fallthru
      _
    // Predicated region
    $region34: #{tpu_custom_call.1} parent=1 // pred_check
      _
    $region35: #{tpu_custom_call.1} parent=1 // pred_check_branch
      %43 = sbr.rel (0) target = $region37
    $region36: #{tpu_custom_call.1} parent=1 // pred_region
      _
    $region37: #{tpu_custom_call.1} parent=1 // pred_fallthru
      _
    // Predicated region
    $region38: #{tpu_custom_call.1} parent=1 // pred_check
      _
    $region39: #{tpu_custom_call.1} parent=1 // pred_check_branch
      %45 = sbr.rel (0) target = $region41
    $region40: #{tpu_custom_call.1} parent=1 // pred_region
      _
    $region41: #{tpu_custom_call.1} parent=1 // pred_fallthru
      _
    // Predicated region
    $region42: #{tpu_custom_call.1} parent=1 // pred_check
      _
    $region43: #{tpu_custom_call.1} parent=1 // pred_check_branch
      %47 = sbr.rel (0) target = $region45
    $region44: #{tpu_custom_call.1} parent=1 // pred_region
      _
    $region45: #{tpu_custom_call.1} parent=1 // pred_fallthru
      _
    // Predicated region
    $region46: #{tpu_custom_call.1} parent=1 // pred_check
      _
    $region47: #{tpu_custom_call.1} parent=1 // pred_check_branch
      %49 = sbr.rel (0) target = $region49
    $region48: #{tpu_custom_call.1} parent=1 // pred_region
      _
    $region49: #{tpu_custom_call.1} parent=1 // pred_fallthru
      _
    // Predicated region
    $region50: #{tpu_custom_call.1} parent=1 // pred_check
      _
    $region51: #{tpu_custom_call.1} parent=1 // pred_check_branch
      %51 = sbr.rel (0) target = $region53
    $region52: #{tpu_custom_call.1} parent=1 // pred_region
      _
    $region53: #{tpu_custom_call.1} parent=1 // pred_fallthru
      _
    // Predicated region
    $region54: #{tpu_custom_call.1} parent=1 // pred_check
      _
    $region55: #{tpu_custom_call.1} parent=1 // pred_check_branch
      %53 = sbr.rel (0) target = $region57
    $region56: #{tpu_custom_call.1} parent=1 // pred_region
      _
    $region57: #{tpu_custom_call.1} parent=1 // pred_fallthru
      _
    // Predicated region
    $region58: #{tpu_custom_call.1} parent=1 // pred_check
      _
    $region59: #{tpu_custom_call.1} parent=1 // pred_check_branch
      %55 = sbr.rel (0) target = $region61
    $region60: #{tpu_custom_call.1} parent=1 // pred_region
      _
    $region61: #{tpu_custom_call.1} parent=1 // pred_fallthru
      _
    // Predicated region
    $region62: #{tpu_custom_call.1} parent=1 // pred_check
      _
    $region63: #{tpu_custom_call.1} parent=1 // pred_check_branch
      %57 = sbr.rel (0) target = $region65
    $region64: #{tpu_custom_call.1} parent=1 // pred_region
      _
    $region65: #{tpu_custom_call.1} parent=1 // pred_fallthru
      _
    // Predicated region
    $region66: #{tpu_custom_call.1} parent=1 // pred_check
      _
    $region67: #{tpu_custom_call.1} parent=1 // pred_check_branch
      %59 = sbr.rel (0) target = $region69
    $region68: #{tpu_custom_call.1} parent=1 // pred_region
      _
    $region69: #{tpu_custom_call.1} parent=1 // pred_fallthru
      _
    // Predicated region
    $region70: #{tpu_custom_call.1} parent=1 // pred_check
      _
    $region71: #{tpu_custom_call.1} parent=1 // pred_check_branch
      %61 = sbr.rel (0) target = $region73
    $region72: #{tpu_custom_call.1} parent=1 // pred_region
      _
    $region73: #{tpu_custom_call.1} parent=1 // pred_fallthru
      _
    // Predicated region
    $region74: #{tpu_custom_call.1} parent=1 // pred_check
      _
    $region75: #{tpu_custom_call.1} parent=1 // pred_check_branch
      %63 = sbr.rel (0) target = $region77
    $region76: #{tpu_custom_call.1} parent=1 // pred_region
      _
    $region77: #{tpu_custom_call.1} parent=1 // pred_fallthru
      _
    // Predicated region
    $region78: #{tpu_custom_call.1} parent=1 // pred_check
      _
    $region79: #{tpu_custom_call.1} parent=1 // pred_check_branch
      %65 = sbr.rel (0) target = $region81
    $region80: #{tpu_custom_call.1} parent=1 // pred_region
      _
    $region81: #{tpu_custom_call.1} parent=1 // pred_fallthru
      _
    %v66 = vlaneseq
    %v67 = vshrl.u32 %v66, 7
    %v68 = vadd.s32 %v67, 8
    %v69 = vadd.s32 %v67, 16
    %v70 = vadd.s32 %v67, 24
    %v71 = vadd.s32 %v67, 32
    %v72 = vadd.s32 %v67, 40
    %v73 = vadd.s32 %v67, 48
    %v74 = vadd.s32 %v67, 56
    %v75 = vadd.s32 %v67, 64
    %v76 = vadd.s32 %v67, 72
    %v77 = vadd.s32 %v67, 80
    %v78 = vadd.s32 %v67, 88
    %v79 = vadd.s32 %v67, 96
    %v80 = vadd.s32 %v67, 104
    %v81 = vadd.s32 %v67, 112
    %v82 = vadd.s32 %v67, 120
    %v83 = vlaneseq
    %v84 = vand.u32 %v83, 127
    %vm85 = vcmp.lt.s32.totalorder %v84, 0
    %v86 = vsub.s32 0, %v84
    %v87 = vsel %vm85, %v86, %v84
    %v88 = vshrl.u32 %v87, 4
    %v89 = vand.u32 %v87, 15
    %v90 = vsub.s32 0, %v89
    %v91 = vsel %vm85, %v90, %v89
    %vm92 = vcmp.ne.s32.totalorder %v91, 0
    %vm93 = vcmp.lt.s32.totalorder %v91, 0
    %vm94 = vmand %vm93, %vm92
    %v95 = vadd.s32 %v91, 16
    %v96 = vsel %vm94, %v95, %v91
    %v97 = vsub.s32 %v84, 1
    %vm98 = vcmp.eq.s32.totalorder %v67, %v97
    %vm99 = vcmp.eq.s32.totalorder %v68, %v97
    %vm100 = vcmp.eq.s32.totalorder %v69, %v97
    %vm101 = vcmp.eq.s32.totalorder %v70, %v97
    %vm102 = vcmp.eq.s32.totalorder %v71, %v97
    %vm103 = vcmp.eq.s32.totalorder %v72, %v97
    %vm104 = vcmp.eq.s32.totalorder %v73, %v97
    %vm105 = vcmp.eq.s32.totalorder %v74, %v97
    %vm106 = vcmp.eq.s32.totalorder %v75, %v97
    %vm107 = vcmp.eq.s32.totalorder %v76, %v97
    %vm108 = vcmp.eq.s32.totalorder %v77, %v97
    %vm109 = vcmp.eq.s32.totalorder %v78, %v97
    %vm110 = vcmp.eq.s32.totalorder %v79, %v97
    %vm111 = vcmp.eq.s32.totalorder %v80, %v97
    %vm112 = vcmp.eq.s32.totalorder %v81, %v97
    %vm113 = vcmp.eq.s32.totalorder %v82, %v97
    %vm114 = vcmp.ne.s32.totalorder %v96, 0
    %vm115 = vmand %vm98, %vm114
    %vm116 = vmand %vm99, %vm114
    %vm117 = vmand %vm100, %vm114
    %vm118 = vmand %vm101, %vm114
    %vm119 = vmand %vm102, %vm114
    %vm120 = vmand %vm103, %vm114
    %vm121 = vmand %vm104, %vm114
    %vm122 = vmand %vm105, %vm114
    %vm123 = vmand %vm106, %vm114
    %vm124 = vmand %vm107, %vm114
    %vm125 = vmand %vm108, %vm114
    %vm126 = vmand %vm109, %vm114
    %vm127 = vmand %vm110, %vm114
    %vm128 = vmand %vm111, %vm114
    %vm129 = vmand %vm112, %vm114
    %vm130 = vmand %vm113, %vm114
    %v131 = vsel %vm115, 1, 0
    %v132 = vsel %vm116, 1, 0
    %v133 = vsel %vm117, 1, 0
    %v134 = vsel %vm118, 1, 0
    %v135 = vsel %vm119, 1, 0
    %v136 = vsel %vm120, 1, 0
    %v137 = vsel %vm121, 1, 0
    %v138 = vsel %vm122, 1, 0
    %v139 = vsel %vm123, 1, 0
    %v140 = vsel %vm124, 1, 0
    %v141 = vsel %vm125, 1, 0
    %v142 = vsel %vm126, 1, 0
    %v143 = vsel %vm127, 1, 0
    %v144 = vsel %vm128, 1, 0
    %v145 = vsel %vm129, 1, 0
    %v146 = vsel %vm130, 1, 0
    %v147 = vcvt.s32.f32 %v131
    %v148 = vcvt.s32.f32 %v132
    %v149 = vcvt.s32.f32 %v133
    %v150 = vcvt.s32.f32 %v134
    %v151 = vcvt.s32.f32 %v135
    %v152 = vcvt.s32.f32 %v136
    %v153 = vcvt.s32.f32 %v137
    %v154 = vcvt.s32.f32 %v138
    %v155 = vcvt.s32.f32 %v139
    %v156 = vcvt.s32.f32 %v140
    %v157 = vcvt.s32.f32 %v141
    %v158 = vcvt.s32.f32 %v142
    %v159 = vcvt.s32.f32 %v143
    %v160 = vcvt.s32.f32 %v144
    %v161 = vcvt.s32.f32 %v145
    %v162 = vcvt.s32.f32 %v146
    %v163 = vadd.s32 %v84, 1
    %vm164 = vcmp.eq.s32.totalorder %v67, %v163
    %vm165 = vcmp.eq.s32.totalorder %v68, %v163
    %vm166 = vcmp.eq.s32.totalorder %v69, %v163
    %vm167 = vcmp.eq.s32.totalorder %v70, %v163
    %vm168 = vcmp.eq.s32.totalorder %v71, %v163
    %vm169 = vcmp.eq.s32.totalorder %v72, %v163
    %vm170 = vcmp.eq.s32.totalorder %v73, %v163
    %vm171 = vcmp.eq.s32.totalorder %v74, %v163
    %vm172 = vcmp.eq.s32.totalorder %v75, %v163
    %vm173 = vcmp.eq.s32.totalorder %v76, %v163
    %vm174 = vcmp.eq.s32.totalorder %v77, %v163
    %vm175 = vcmp.eq.s32.totalorder %v78, %v163
    %vm176 = vcmp.eq.s32.totalorder %v79, %v163
    %vm177 = vcmp.eq.s32.totalorder %v80, %v163
    %vm178 = vcmp.eq.s32.totalorder %v81, %v163
    %vm179 = vcmp.eq.s32.totalorder %v82, %v163
    %vm180 = vcmp.ne.s32.totalorder %v96, 15
    %vm181 = vmand %vm164, %vm180
    %vm182 = vmand %vm165, %vm180
    %vm183 = vmand %vm166, %vm180
    %vm184 = vmand %vm167, %vm180
    %vm185 = vmand %vm168, %vm180
    %vm186 = vmand %vm169, %vm180
    %vm187 = vmand %vm170, %vm180
    %vm188 = vmand %vm171, %vm180
    %vm189 = vmand %vm172, %vm180
    %vm190 = vmand %vm173, %vm180
    %vm191 = vmand %vm174, %vm180
    %vm192 = vmand %vm175, %vm180
    %vm193 = vmand %vm176, %vm180
    %vm194 = vmand %vm177, %vm180
    %vm195 = vmand %vm178, %vm180
    %vm196 = vmand %vm179, %vm180
    %v197 = vsel %vm181, 1, 0
    %v198 = vsel %vm182, 1, 0
    %v199 = vsel %vm183, 1, 0
    %v200 = vsel %vm184, 1, 0
    %v201 = vsel %vm185, 1, 0
    %v202 = vsel %vm186, 1, 0
    %v203 = vsel %vm187, 1, 0
    %v204 = vsel %vm188, 1, 0
    %v205 = vsel %vm189, 1, 0
    %v206 = vsel %vm190, 1, 0
    %v207 = vsel %vm191, 1, 0
    %v208 = vsel %vm192, 1, 0
    %v209 = vsel %vm193, 1, 0
    %v210 = vsel %vm194, 1, 0
    %v211 = vsel %vm195, 1, 0
    %v212 = vsel %vm196, 1, 0
    %v213 = vcvt.s32.f32 %v197
    %v214 = vcvt.s32.f32 %v198
    %v215 = vcvt.s32.f32 %v199
    %v216 = vcvt.s32.f32 %v200
    %v217 = vcvt.s32.f32 %v201
    %v218 = vcvt.s32.f32 %v202
    %v219 = vcvt.s32.f32 %v203
    %v220 = vcvt.s32.f32 %v204
    %v221 = vcvt.s32.f32 %v205
    %v222 = vcvt.s32.f32 %v206
    %v223 = vcvt.s32.f32 %v207
    %v224 = vcvt.s32.f32 %v208
    %v225 = vcvt.s32.f32 %v209
    %v226 = vcvt.s32.f32 %v210
    %v227 = vcvt.s32.f32 %v211
    %v228 = vcvt.s32.f32 %v212
    %v229 = vld [vmem:[%s0] sm:$0xff]
    %v230 = vld [vmem:[%s1] sm:$0xff]
    %v231 = vadd.f32 %v229, %v230
    %v232 = vld [vmem:[%s2] sm:$0xff]
    %v233 = vld [vmem:[%s3] sm:$0xff]
    %235 = vset.pattern.permute.xlu0 0
    %236 = vperm.xlu0 %235, %v233
    %v237 = vpop.permute.xlu0 %236
    %vm239 = vcmask 64512
    %v241 = vsel %vm239, %v232, 0
    %243 = vmatpush.msra.mxu0 0.0
    %244 = vmatpush.msra.mxu0 0.0
    %245 = vmatpush.msra.mxu0 0.0
    %246 = vmatpush.msra.mxu0 0.0
    %247 = vmatpush.msra.mxu0 0.0
    %248 = vmatpush.msra.mxu0 0.0
    %249 = vmatpush.msra.mxu0 0.0
    %250 = vmatpush.msra.mxu0 0.0
    %251 = vmatpush.msra.mxu0 0.0
    %252 = vmatpush.msra.mxu0 0.0
    %253 = vmatpush.msra.mxu0 0.0
    %254 = vmatpush.msra.mxu0 0.0
    %255 = vmatpush.msra.mxu0 0.0
    %256 = vmatpush.msra.mxu0 0.0
    %257 = vmatpush.msra.mxu0 0.0
    %258 = vmatpush.msra.mxu0 %v231
    %259 = vmatmul.f32.gmra.mxu0 %v241
    %v260 = vpop.f32.mrf.mxu0
    %v261 = vadd.f32 %v237, %v260
    %262 = vdwg.mxu0
    %263 = vst [vmem:[#allocation2 + $0x10] sm:$0xff] %v261
    %v264 = vld [vmem:[%s4] sm:$0xff]
    %266 = vset.pattern.permute.xlu0 0
    %267 = vperm.xlu0 %266, %v264
    %v268 = vpop.permute.xlu0 %267
    %v270 = vmul.f32 %v261, %v268
    %v271 = vld [vmem:[%s5] sm:$0xff]
    %273 = vset.pattern.permute.xlu0 0
    %274 = vperm.xlu0 %273, %v271
    %v275 = vpop.permute.xlu0 %274
    %v277 = vadd.f32 %v270, %v275
    %v278 = vmax.f32 %v277, 0.0
    %v279 = vld [vmem:[%s6] sm:$0xff]
    %v280 = vld [vmem:[%s6 + $0x8] sm:$0xff]
    %v281 = vld [vmem:[%s7] sm:$0xff]
    %v282 = vld [vmem:[%s7 + $0x8] sm:$0xff]
    %284 = vset.pattern.permute.xlu0 0
    %285 = vperm.xlu0 %284, %v281
    %v286 = vpop.permute.xlu0 %285
    %289 = vset.pattern.permute.xlu0 0
    %290 = vperm.xlu0 %289, %v282
    %v291 = vpop.permute.xlu0 %290
    %v294 = vsel %vm239, %v279, 0
    %v297 = vsel %vm239, %v280, 0
    %299 = vmatpush.msra.mxu0 0.0
    %300 = vmatpush.msra.mxu0 0.0
    %301 = vmatpush.msra.mxu0 0.0
    %302 = vmatpush.msra.mxu0 0.0
    %303 = vmatpush.msra.mxu0 0.0
    %304 = vmatpush.msra.mxu0 0.0
    %305 = vmatpush.msra.mxu0 0.0
    %306 = vmatpush.msra.mxu0 0.0
    %307 = vmatpush.msra.mxu0 0.0
    %308 = vmatpush.msra.mxu0 0.0
    %309 = vmatpush.msra.mxu0 0.0
    %310 = vmatpush.msra.mxu0 0.0
    %311 = vmatpush.msra.mxu0 0.0
    %312 = vmatpush.msra.mxu0 0.0
    %313 = vmatpush.msra.mxu0 0.0
    %314 = vmatpush.msra.mxu0 %v278
    %315 = vmatmul.f32.gmra.mxu0 %v294
    %v316 = vpop.f32.mrf.mxu0
    %v317 = vadd.f32 %v286, %v316
    %318 = vmatmul.f32.gmra.mxu0 %v297
    %v319 = vpop.f32.mrf.mxu0
    %v320 = vadd.f32 %v291, %v319
    %321 = vdwg.mxu0
    %v322 = vld [vmem:[%s8] sm:$0xff]
    %v323 = vld [vmem:[%s8 + $0x8] sm:$0xff]
    %325 = vset.pattern.permute.xlu0 0
    %326 = vperm.xlu0 %325, %v322
    %v327 = vpop.permute.xlu0 %326
    %330 = vset.pattern.permute.xlu0 0
    %331 = vperm.xlu0 %330, %v323
    %v332 = vpop.permute.xlu0 %331
    %v334 = vmul.f32 %v317, %v327
    %v335 = vmul.f32 %v320, %v332
    %v336 = vld [vmem:[%s9] sm:$0xff]
    %v337 = vld [vmem:[%s9 + $0x8] sm:$0xff]
    %339 = vset.pattern.permute.xlu0 0
    %340 = vperm.xlu0 %339, %v336
    %v341 = vpop.permute.xlu0 %340
    %344 = vset.pattern.permute.xlu0 0
    %345 = vperm.xlu0 %344, %v337
    %v346 = vpop.permute.xlu0 %345
    %v348 = vadd.f32 %v334, %v341
    %v349 = vadd.f32 %v335, %v346
    %v350 = vmax.f32 %v348, 0.0
    %v351 = vmax.f32 %v349, 0.0
    %352 = vmatpush.msra.mxu0 %v162
    %353 = vmatpush.msra.mxu0 %v161
    %354 = vmatpush.msra.mxu0 %v160
    %355 = vmatpush.msra.mxu0 %v159
    %356 = vmatpush.msra.mxu0 %v158
    %357 = vmatpush.msra.mxu0 %v157
    %358 = vmatpush.msra.mxu0 %v156
    %359 = vmatpush.msra.mxu0 %v155
    %360 = vmatpush.msra.mxu0 %v154
    %361 = vmatpush.msra.mxu0 %v153
    %362 = vmatpush.msra.mxu0 %v152
    %363 = vmatpush.msra.mxu0 %v151
    %364 = vmatpush.msra.mxu0 %v150
    %365 = vmatpush.msra.mxu0 %v149
    %366 = vmatpush.msra.mxu0 %v148
    %367 = vmatpush.msra.mxu0 %v147
    %368 = vmatmul.f32.gmra.mxu0 %v350
    %v369 = vpop.f32.mrf.mxu0
    %v370 = vadd.f32 0.0, %v369
    %371 = vmatmul.f32.gmra.mxu0 %v351
    %v372 = vpop.f32.mrf.mxu0
    %v373 = vadd.f32 0.0, %v372
    %374 = vdwg.mxu0
    %375 = vmatpush.msra.mxu0 %v228
    %376 = vmatpush.msra.mxu0 %v227
    %377 = vmatpush.msra.mxu0 %v226
    %378 = vmatpush.msra.mxu0 %v225
    %379 = vmatpush.msra.mxu0 %v224
    %380 = vmatpush.msra.mxu0 %v223
    %381 = vmatpush.msra.mxu0 %v222
    %382 = vmatpush.msra.mxu0 %v221
    %383 = vmatpush.msra.mxu0 %v220
    %384 = vmatpush.msra.mxu0 %v219
    %385 = vmatpush.msra.mxu0 %v218
    %386 = vmatpush.msra.mxu0 %v217
    %387 = vmatpush.msra.mxu0 %v216
    %388 = vmatpush.msra.mxu0 %v215
    %389 = vmatpush.msra.mxu0 %v214
    %390 = vmatpush.msra.mxu0 %v213
    %391 = vmatmul.f32.gmra.mxu0 %v350
    %v392 = vpop.f32.mrf.mxu0
    %v393 = vadd.f32 0.0, %v392
    %394 = vmatmul.f32.gmra.mxu0 %v351
    %v395 = vpop.f32.mrf.mxu0
    %v396 = vadd.f32 0.0, %v395
    %397 = vdwg.mxu0
    %v398 = vld [vmem:[%s10] sm:$0xff]
    %v399 = vld [vmem:[%s11] sm:$0xff]
    %401 = vset.pattern.permute.xlu0 0
    %402 = vperm.xlu0 %401, %v399
    %v403 = vpop.permute.xlu0 %402
    %vm405 = vcmask 392192
    %v407 = vsel %vm405, %v398, 0
    %409 = vmatpush.msra.mxu0 0.0
    %410 = vmatpush.msra.mxu0 0.0
    %411 = vmatpush.msra.mxu0 0.0
    %412 = vmatpush.msra.mxu0 0.0
    %413 = vmatpush.msra.mxu0 0.0
    %414 = vmatpush.msra.mxu0 0.0
    %415 = vmatpush.msra.mxu0 0.0
    %416 = vmatpush.msra.mxu0 0.0
    %417 = vmatpush.msra.mxu0 0.0
    %418 = vmatpush.msra.mxu0 0.0
    %419 = vmatpush.msra.mxu0 %v396
    %420 = vmatpush.msra.mxu0 %v393
    %421 = vmatpush.msra.mxu0 %v351
    %422 = vmatpush.msra.mxu0 %v350
    %423 = vmatpush.msra.mxu0 %v373
    %424 = vmatpush.msra.mxu0 %v370
    %425 = vmatmul.f32.gmra.mxu0 %v407
    %v426 = vpop.f32.mrf.mxu0
    %v427 = vadd.f32 %v403, %v426
    %428 = vdwg.mxu0
    %429 = vst [vmem:[#allocation2 + $0x8] sm:$0xff] %v427
    %v430 = vld [vmem:[%s12] sm:$0xff]
    %v431 = vld [vmem:[%s12 + $0x8] sm:$0xff]
    %433 = vset.pattern.permute.xlu0 0
    %434 = vperm.xlu0 %433, %v430
    %v435 = vpop.permute.xlu0 %434
    %438 = vset.pattern.permute.xlu0 0
    %439 = vperm.xlu0 %438, %v431
    %v440 = vpop.permute.xlu0 %439
    %v442 = vmul.f32 %v427, %v435
    %v443 = vmul.f32 %v261, %v440
    %v444 = vld [vmem:[%s13] sm:$0xff]
    %v445 = vld [vmem:[%s13 + $0x8] sm:$0xff]
    %447 = vset.pattern.permute.xlu0 0
    %448 = vperm.xlu0 %447, %v444
    %v449 = vpop.permute.xlu0 %448
    %452 = vset.pattern.permute.xlu0 0
    %453 = vperm.xlu0 %452, %v445
    %v454 = vpop.permute.xlu0 %453
    %v456 = vadd.f32 %v442, %v449
    %v457 = vadd.f32 %v443, %v454
    %v458 = vmax.f32 %v456, 0.0
    %v459 = vmax.f32 %v457, 0.0
    %v460 = vld [vmem:[%s14] sm:$0xff]
    %v461 = vld [vmem:[%s14 + $0x8] sm:$0xff]
    %v462 = vld [vmem:[%s15] sm:$0xff]
    %v463 = vld [vmem:[%s15 + $0x8] sm:$0xff]
    %465 = vset.pattern.permute.xlu0 0
    %466 = vperm.xlu0 %465, %v462
    %v467 = vpop.permute.xlu0 %466
    %470 = vset.pattern.permute.xlu0 0
    %471 = vperm.xlu0 %470, %v463
    %v472 = vpop.permute.xlu0 %471
    %vm474 = vcmask 130048
    %v476 = vsel %vm474, %v460, 0
    %v479 = vsel %vm474, %v461, 0
    %481 = vmatpush.msra.mxu0 0.0
    %482 = vmatpush.msra.mxu0 0.0
    %483 = vmatpush.msra.mxu0 0.0
    %484 = vmatpush.msra.mxu0 0.0
    %485 = vmatpush.msra.mxu0 0.0
    %486 = vmatpush.msra.mxu0 0.0
    %487 = vmatpush.msra.mxu0 0.0
    %488 = vmatpush.msra.mxu0 0.0
    %489 = vmatpush.msra.mxu0 0.0
    %490 = vmatpush.msra.mxu0 0.0
    %491 = vmatpush.msra.mxu0 0.0
    %492 = vmatpush.msra.mxu0 0.0
    %493 = vmatpush.msra.mxu0 0.0
    %494 = vmatpush.msra.mxu0 0.0
    %495 = vmatpush.msra.mxu0 %v459
    %496 = vmatpush.msra.mxu0 %v458
    %497 = vmatmul.f32.gmra.mxu0 %v476
    %v498 = vpop.f32.mrf.mxu0
    %v499 = vadd.f32 %v467, %v498
    %500 = vmatmul.f32.gmra.mxu0 %v479
    %v501 = vpop.f32.mrf.mxu0
    %v502 = vadd.f32 %v472, %v501
    %503 = vdwg.mxu0
    %v504 = vld [vmem:[%s16] sm:$0xff]
    %v505 = vld [vmem:[%s16 + $0x8] sm:$0xff]
    %507 = vset.pattern.permute.xlu0 0
    %508 = vperm.xlu0 %507, %v504
    %v509 = vpop.permute.xlu0 %508
    %512 = vset.pattern.permute.xlu0 0
    %513 = vperm.xlu0 %512, %v505
    %v514 = vpop.permute.xlu0 %513
    %v516 = vmul.f32 %v499, %v509
    %v517 = vmul.f32 %v502, %v514
    %v518 = vld [vmem:[%s17] sm:$0xff]
    %v519 = vld [vmem:[%s17 + $0x8] sm:$0xff]
    %521 = vset.pattern.permute.xlu0 0
    %522 = vperm.xlu0 %521, %v518
    %v523 = vpop.permute.xlu0 %522
    %526 = vset.pattern.permute.xlu0 0
    %527 = vperm.xlu0 %526, %v519
    %v528 = vpop.permute.xlu0 %527
    %v530 = vadd.f32 %v516, %v523
    %v531 = vadd.f32 %v517, %v528
    %v532 = vmax.f32 %v530, 0.0
    %v533 = vmax.f32 %v531, 0.0
    %534 = vmatpush.msra.mxu0 %v162
    %535 = vmatpush.msra.mxu0 %v161
    %536 = vmatpush.msra.mxu0 %v160
    %537 = vmatpush.msra.mxu0 %v159
    %538 = vmatpush.msra.mxu0 %v158
    %539 = vmatpush.msra.mxu0 %v157
    %540 = vmatpush.msra.mxu0 %v156
    %541 = vmatpush.msra.mxu0 %v155
    %542 = vmatpush.msra.mxu0 %v154
    %543 = vmatpush.msra.mxu0 %v153
    %544 = vmatpush.msra.mxu0 %v152
    %545 = vmatpush.msra.mxu0 %v151
    %546 = vmatpush.msra.mxu0 %v150
    %547 = vmatpush.msra.mxu0 %v149
    %548 = vmatpush.msra.mxu0 %v148
    %549 = vmatpush.msra.mxu0 %v147
    %550 = vmatmul.f32.gmra.mxu0 %v532
    %v551 = vpop.f32.mrf.mxu0
    %v552 = vadd.f32 0.0, %v551
    %553 = vmatmul.f32.gmra.mxu0 %v533
    %v554 = vpop.f32.mrf.mxu0
    %v555 = vadd.f32 0.0, %v554
    %556 = vdwg.mxu0
    %557 = vmatpush.msra.mxu0 %v228
    %558 = vmatpush.msra.mxu0 %v227
    %559 = vmatpush.msra.mxu0 %v226
    %560 = vmatpush.msra.mxu0 %v225
    %561 = vmatpush.msra.mxu0 %v224
    %562 = vmatpush.msra.mxu0 %v223
    %563 = vmatpush.msra.mxu0 %v222
    %564 = vmatpush.msra.mxu0 %v221
    %565 = vmatpush.msra.mxu0 %v220
    %566 = vmatpush.msra.mxu0 %v219
    %567 = vmatpush.msra.mxu0 %v218
    %568 = vmatpush.msra.mxu0 %v217
    %569 = vmatpush.msra.mxu0 %v216
    %570 = vmatpush.msra.mxu0 %v215
    %571 = vmatpush.msra.mxu0 %v214
    %572 = vmatpush.msra.mxu0 %v213
    %573 = vmatmul.f32.gmra.mxu0 %v532
    %v574 = vpop.f32.mrf.mxu0
    %v575 = vadd.f32 0.0, %v574
    %576 = vmatmul.f32.gmra.mxu0 %v533
    %v577 = vpop.f32.mrf.mxu0
    %v578 = vadd.f32 0.0, %v577
    %579 = vdwg.mxu0
    %v580 = vld [vmem:[%s18] sm:$0xff]
    %v581 = vld [vmem:[%s19] sm:$0xff]
    %583 = vset.pattern.permute.xlu0 0
    %584 = vperm.xlu0 %583, %v581
    %v585 = vpop.permute.xlu0 %584
    %v588 = vsel %vm405, %v580, 0
    %590 = vmatpush.msra.mxu0 0.0
    %591 = vmatpush.msra.mxu0 0.0
    %592 = vmatpush.msra.mxu0 0.0
    %593 = vmatpush.msra.mxu0 0.0
    %594 = vmatpush.msra.mxu0 0.0
    %595 = vmatpush.msra.mxu0 0.0
    %596 = vmatpush.msra.mxu0 0.0
    %597 = vmatpush.msra.mxu0 0.0
    %598 = vmatpush.msra.mxu0 0.0
    %599 = vmatpush.msra.mxu0 0.0
    %600 = vmatpush.msra.mxu0 %v578
    %601 = vmatpush.msra.mxu0 %v575
    %602 = vmatpush.msra.mxu0 %v533
    %603 = vmatpush.msra.mxu0 %v532
    %604 = vmatpush.msra.mxu0 %v555
    %605 = vmatpush.msra.mxu0 %v552
    %606 = vmatmul.f32.gmra.mxu0 %v588
    %v607 = vpop.f32.mrf.mxu0
    %v608 = vadd.f32 %v585, %v607
    %609 = vdwg.mxu0
    %610 = vst [vmem:[#allocation2] sm:$0xff] %v608
    // Predicated region
    $region82: #{tpu_custom_call.1} parent=1 // pred_check
      _
    $region83: #{tpu_custom_call.1} parent=1 // pred_check_branch
      %612 = sbr.rel (0) target = $region85
    $region84: #{tpu_custom_call.1} parent=1 // pred_region
      %614 = vsyncadd [#allocation3], 0
      %s615 = sshll.u32 [#allocation2], 4
      %s616 = int_to_ptr.vmem [resolvable:$true] %s615
      %s617 = sshll.u32 %s20, 4
      %s618 = int_to_ptr.hbm [resolvable:$true] %s617
      %623 = dma.vmem_to_hbm [thread:$0]  %s616, 384, %s618, [#allocation3], 128, 128, 8
    $region85: #{tpu_custom_call.1} parent=1 // pred_fallthru
      _
    // Predicated region
    $region86: #{tpu_custom_call.1} parent=1 // pred_check
      _
    $region87: #{tpu_custom_call.1} parent=1 // pred_check_branch
      %625 = sbr.rel (0) target = $region89
    $region88: #{tpu_custom_call.1} parent=1 // pred_region
      %627 = dma.done [#allocation3], 384
    $region89: #{tpu_custom_call.1} parent=1 // pred_fallthru
      _
    %628 = vsyncpa [#allocation3], 1

</llo_original>
